<compile_context>
chip_gen: v6e
topology: v6e:2x2x1
jax: 0.10.0
libtpu: 0.0.40
codegen_flags: <defaults>
</compile_context>

<pallas_src>
import jax
import jax.numpy as jnp
import numpy as np
from jax import lax
from jax.experimental import pallas as pl
from jax.experimental.pallas import tpu as pltpu

INPUT_DIM = 1
HIDDEN = 32
OUTPUT_DIM = 10
OUT_PAD = 128     # lane-dense padded FC output width (sliced back to OUTPUT_DIM outside)
SUBLANES = 8      # f32 vreg sublane count; batch padded to a multiple of this

H = HIDDEN
G4 = 4 * H        # 128: per-layer gate width
G8 = 8 * H        # 256: fused (layer-1 @ t, layer-0 @ t+1) gate width
PACK_ROWS = 3 * H + 8   # 104: rows of the packed parameter buffer


# --------------------------------------------------------------------------------------
# One-time parameter preprocessing into kernel layout (cache the result; do NOT re-run per call)
# --------------------------------------------------------------------------------------
def prepare_params(params):
    """Packs all weights into a single lane-dense (PACK_ROWS, 8H) f32 buffer.

    Row layout:
      rows 0:2H    fused recurrent RHS W_f (2H, 8H), gate pre-scale baked in
      rows 2H:3H   FC weight, cols 0:OUTPUT_DIM real, rest zero
      rows 3H:3H+8 packed vectors:
        0: add_const  = interleave(b1, b0)           (pre-scaled)
        1: wih0_row   = interleave(0,  w_ih0 row)    (pre-scaled)
        2: g_scale    = post-tanh scale  (0.5 on sigmoid lanes, 1.0 on tanh lanes)
        3: g_off      = post-tanh offset (0.5 on sigmoid lanes, 0.0 on tanh lanes)
        4: fc bias in cols 0:OUTPUT_DIM
        5: bmask: [0]*H ++ [1]*H  (zeroes the layer-1 half of the t=0 peel)
    """
    (w_ih0, w_hh0, b_ih0, b_hh0,
     w_ih1, w_hh1, b_ih1, b_hh1, fc_w, fc_b) = [jnp.asarray(p, jnp.float32) for p in params]

    def interleave(a, b):
        # a, b: (..., 4H) -> (..., 8H): per gate k, columns [a_k (H) | b_k (H)].
        lead = a.shape[:-1]
        a4 = a.reshape(lead + (4, 1, H))
        b4 = b.reshape(lead + (4, 1, H))
        return jnp.concatenate([a4, b4], axis=-2).reshape(lead + (G8,))

    half = jnp.full((H,), 0.5, jnp.float32)
    one = jnp.ones((H,), jnp.float32)
    zero = jnp.zeros((H,), jnp.float32)
    # sigmoid(x) = 0.5*tanh(x/2) + 0.5  -> pre-scale i/f/o gate columns by 0.5, g stays tanh.
    s4 = jnp.concatenate([half, half, one, half])    # pre-scale per gate (i, f, g, o)
    o4 = jnp.concatenate([half, half, zero, half])   # post-tanh offset per gate
    s8 = interleave(s4, s4)
    off8 = interleave(o4, o4)

    b0 = b_ih0 + b_hh0
    b1 = b_ih1 + b_hh1

    # Fused RHS: rows 0:H multiply h1(t-1), rows H:2H multiply h0(t).
    wf_top = interleave(w_hh1.T, jnp.zeros((H, G4), jnp.float32))   # (H, 8H)
    wf_bot = interleave(w_ih1.T, w_hh0.T)                           # (H, 8H)
    w_f = jnp.concatenate([wf_top, wf_bot], axis=0) * s8            # (2H, 8H)

    add_const = interleave(b1, b0) * s8                             # (8H,)
    wih0_row = interleave(jnp.zeros((G4,), jnp.float32), w_ih0[:, 0]) * s8
    bmask = jnp.concatenate([jnp.zeros((H,), jnp.float32), jnp.ones((H,), jnp.float32)])

    fc_block = jnp.zeros((H, G8), jnp.float32).at[:, :OUTPUT_DIM].set(fc_w.T)

    consts = jnp.zeros((8, G8), jnp.float32)
    consts = consts.at[0, :].set(add_const)
    consts = consts.at[1, :].set(wih0_row)
    consts = consts.at[2, :].set(s8)
    consts = consts.at[3, :].set(off8)
    consts = consts.at[4, :OUTPUT_DIM].set(fc_b)
    consts = consts.at[5, :2 * H].set(bmask)

    wpack = jnp.concatenate([w_f, fc_block, consts], axis=0)        # (104, 256)
    assert wpack.shape == (PACK_ROWS, G8)
    return wpack


# --------------------------------------------------------------------------------------
# Kernel
# --------------------------------------------------------------------------------------
def wine_lstm_kernel(x_ref,     # (T+1, Bp, 1)  raw inputs, trailing timestep is a zero pad
                     w_ref,     # (PACK_ROWS, 8H) packed parameters (see prepare_params)
                     out_ref):  # (Bp, OUT_PAD)
    T = x_ref.shape[0] - 1

    # Hoisted loop-invariant parameter loads (static Ref slices, aligned to (8,128) tiles).
    w_f = w_ref[0:2 * H, :]                     # (2H, 8H) fused recurrent weights
    fcw = w_ref[2 * H:3 * H, 0:OUT_PAD]         # (H, 128) padded FC weights
    consts = w_ref[3 * H:3 * H + 8, :]          # (8, 8H) packed vectors
    add_const = consts[0:1, :]
    wih0 = consts[1:2, :]
    g_scale = consts[2:3, :]
    g_off = consts[3:4, :]
    fcb = consts[4:5, 0:OUT_PAD]
    bmask = consts[5:6, 0:2 * H]

    def activate(g):
        # Single EUP pass: sigmoid lanes = 0.5*tanh(x/2)+0.5 (0.5 pre-baked into weights),
        # tanh lanes pass through (scale 1, offset 0).
        return g_scale * jnp.tanh(g) + g_off

    def cell(act, c_prev):
        # act layout (per-gate interleaved): [i1 i0 | f1 f0 | g1 g0 | o1 o0], each block 2H wide.
        i = act[:, 0:2 * H]
        f = act[:, 2 * H:4 * H]
        g = act[:, 4 * H:6 * H]
        o = act[:, 6 * H:8 * H]
        c_new = f * c_prev + i * g              # [c1(t) | c0(t+1)]
        h_new = o * jnp.tanh(c_new)             # [h1(t) | h0(t+1)] == next step's matmul LHS
        return h_new, c_new

    # ---- t = 0 peel: all state is zero -> no MXU op, no f*c term. ----
    act0 = activate(x_ref[0] * wih0 + add_const)                # (Bp, 8H)
    c = (act0[:, 0:2 * H] * act0[:, 4 * H:6 * H]) * bmask       # [0 | c0(0)]
    h = act0[:, 6 * H:8 * H] * jnp.tanh(c)                      # [0 | h0(0)] (tanh(0)=0 zeroes A half)

    # ---- steady state: ONE (Bp,2H)x(2H,8H) MXU op per timestep; the two layers' cell
    # updates run as a single lane-parallel (Bp,2H) update and need no concatenate. ----
    def step(t, carry):
        h, c = carry
        gates = (jnp.dot(h, w_f, preferred_element_type=jnp.float32)
                 + x_ref[t + 1] * wih0 + add_const)             # layer-0 x-projection on the VPU
        return cell(activate(gates), c)

    h, _ = lax.fori_loop(0, T, step, (h, c), unroll=True)
    # h = [h1(T-1) | h0(T) (computed from the zero-padded step, discarded)]

    # Final FC + ReLU on the last top-layer hidden state; lane-dense 128-wide store.
    logits = jnp.dot(h[:, 0:H], fcw, preferred_element_type=jnp.float32) + fcb
    out_ref[...] = jnp.maximum(logits, 0.0)


# --------------------------------------------------------------------------------------
# Per-call wrapper (only x-layout plumbing happens here; weights are pre-packed)
# --------------------------------------------------------------------------------------
@jax.jit
def wine_lstm_forward(x, wpack):
    """x: (B, T, INPUT_DIM) float32; wpack: prepare_params(params). Returns (B, OUTPUT_DIM)."""
    B, T, D = x.shape
    assert D == INPUT_DIM
    Bp = ((B + SUBLANES - 1) // SUBLANES) * SUBLANES

    # (B,T,1) -> (T+1, Bp, 1): time-major, batch padded to full sublanes, plus one zero
    # timestep so the fused step at t=T-1 has an x(t+1) to read (its result is discarded).
    x_t = jnp.transpose(x, (1, 0, 2))
    x_k = jnp.pad(x_t, ((0, 1), (0, Bp - B), (0, 0)))

    vmem = pl.BlockSpec(memory_space=pltpu.MemorySpace.VMEM)
    out = pl.pallas_call(
        wine_lstm_kernel,
        out_shape=jax.ShapeDtypeStruct((Bp, OUT_PAD), jnp.float32),
        in_specs=[vmem, vmem],
        out_specs=vmem,
    )(x_k, wpack)
    return out[:B, :OUTPUT_DIM]


# --------------------------------------------------------------------------------------
# Deterministic synthetic weights with PyTorch nn.LSTM / nn.Linear shapes
# --------------------------------------------------------------------------------------
def init_params(key):
    ks = jax.random.split(key, 10)
    scale = 1.0 / np.sqrt(HIDDEN)
    u = lambda k, shape: jax.random.uniform(k, shape, jnp.float32, -scale, scale)

    w_ih0 = u(ks[0], (4 * HIDDEN, INPUT_DIM))   # weight_ih_l0
    w_hh0 = u(ks[1], (4 * HIDDEN, HIDDEN))      # weight_hh_l0
    b_ih0 = u(ks[2], (4 * HIDDEN,))
    b_hh0 = u(ks[3], (4 * HIDDEN,))
    w_ih1 = u(ks[4], (4 * HIDDEN, HIDDEN))      # weight_ih_l1
    w_hh1 = u(ks[5], (4 * HIDDEN, HIDDEN))      # weight_hh_l1
    b_ih1 = u(ks[6], (4 * HIDDEN,))
    b_hh1 = u(ks[7], (4 * HIDDEN,))
    fc_w = u(ks[8], (OUTPUT_DIM, HIDDEN))       # Linear weight
    fc_b = u(ks[9], (OUTPUT_DIM,))
    return (w_ih0, w_hh0, b_ih0, b_hh0, w_ih1, w_hh1, b_ih1, b_hh1, fc_w, fc_b)


def reference_forward(x, params):
    """Pure NumPy (float64) reference matching PyTorch nn.LSTM / nn.Linear semantics."""
    (w_ih0, w_hh0, b_ih0, b_hh0,
     w_ih1, w_hh1, b_ih1, b_hh1, fc_w, fc_b) = [np.asarray(p, np.float64) for p in params]
    x = np.asarray(x, np.float64)
    B, T, _ = x.shape

    def sigmoid(v):
        return 1.0 / (1.0 + np.exp(-v))

    def cell(x_in, h, c, w_ih, w_hh, b_ih, b_hh):
        g = x_in @ w_ih.T + h @ w_hh.T + b_ih + b_hh
        i = sigmoid(g[:, 0:H])
        f = sigmoid(g[:, H:2 * H])
        gg = np.tanh(g[:, 2 * H:3 * H])
        o = sigmoid(g[:, 3 * H:4 * H])
        c = f * c + i * gg
        return o * np.tanh(c), c

    h0 = c0 = h1 = c1 = np.zeros((B, H), np.float64)
    for t in range(T):
        h0, c0 = cell(x[:, t, :], h0, c0, w_ih0, w_hh0, b_ih0, b_hh0)
        h1, c1 = cell(h0, h1, c1, w_ih1, w_hh1, b_ih1, b_hh1)
    return np.maximum(h1 @ fc_w.T + fc_b, 0.0)


if __name__ == "__main__":
    key = jax.random.PRNGKey(0)
    k_x, k_p = jax.random.split(key)

    B, T = 2, 8
    x = jax.random.normal(k_x, (B, T, INPUT_DIM), jnp.float32)
    params = init_params(k_p)

    # One-time weight preprocessing into kernel layout (cached across calls).
    wpack = jax.block_until_ready(prepare_params(params))

    out = wine_lstm_forward(x, wpack)
    out = jax.block_until_ready(out)

    ref = reference_forward(x, params)
    np.testing.assert_allclose(np.asarray(out, np.float64), ref, rtol=1e-4, atol=1e-4)

    print("KERNEL_OK")
</pallas_src>

<mosaic_0001>
module attributes {stable_mosaic.version = 11 : i64} {
  func.func @wine_lstm_kernel(%arg0: memref<9x8x1xf32, #tpu.memory_space<vmem>>, %arg1: memref<104x256xf32, #tpu.memory_space<vmem>>, %arg2: memref<8x128xf32, #tpu.memory_space<vmem>>) attributes {dimension_semantics = [], scalar_prefetch = 0 : i64, scratch_operands = 0 : i64, tpu.core_type = #tpu.core_type<tc>} {
    %c0 = arith.constant 0 : index
    %c0_0 = arith.constant 0 : index
    %0 = vector.load %arg1[%c0, %c0_0] : memref<104x256xf32, #tpu.memory_space<vmem>>, vector<64x256xf32>
    %c64 = arith.constant 64 : index
    %c0_1 = arith.constant 0 : index
    %1 = vector.load %arg1[%c64, %c0_1] : memref<104x256xf32, #tpu.memory_space<vmem>>, vector<32x128xf32>
    %c96 = arith.constant 96 : index
    %c0_2 = arith.constant 0 : index
    %2 = vector.load %arg1[%c96, %c0_2] : memref<104x256xf32, #tpu.memory_space<vmem>>, vector<8x256xf32>
    %3 = vector.extract_strided_slice %2 {offsets = [0, 0], sizes = [1, 256], strides = [1, 1]} : vector<8x256xf32> to vector<1x256xf32>
    %4 = vector.extract_strided_slice %2 {offsets = [1, 0], sizes = [1, 256], strides = [1, 1]} : vector<8x256xf32> to vector<1x256xf32>
    %5 = vector.extract_strided_slice %2 {offsets = [2, 0], sizes = [1, 256], strides = [1, 1]} : vector<8x256xf32> to vector<1x256xf32>
    %6 = vector.extract_strided_slice %2 {offsets = [3, 0], sizes = [1, 256], strides = [1, 1]} : vector<8x256xf32> to vector<1x256xf32>
    %7 = vector.extract_strided_slice %2 {offsets = [4, 0], sizes = [1, 128], strides = [1, 1]} : vector<8x256xf32> to vector<1x128xf32>
    %8 = vector.extract_strided_slice %2 {offsets = [5, 0], sizes = [1, 64], strides = [1, 1]} : vector<8x256xf32> to vector<1x64xf32>
    %c0_3 = arith.constant 0 : index
    %c0_4 = arith.constant 0 : index
    %c0_5 = arith.constant 0 : index
    %9 = vector.load %arg0[%c0_3, %c0_4, %c0_5] : memref<9x8x1xf32, #tpu.memory_space<vmem>>, vector<1x8x1xf32>
    %10 = vector.shape_cast %9 : vector<1x8x1xf32> to vector<8x1xf32>
    %11 = vector.broadcast %10 : vector<8x1xf32> to vector<8x256xf32>
    %12 = vector.broadcast %4 : vector<1x256xf32> to vector<8x256xf32>
    %13 = arith.mulf %11, %12 : vector<8x256xf32>
    %14 = vector.broadcast %3 : vector<1x256xf32> to vector<8x256xf32>
    %15 = arith.addf %13, %14 : vector<8x256xf32>
    %16 = math.tanh %15 : vector<8x256xf32>
    %17 = vector.broadcast %5 : vector<1x256xf32> to vector<8x256xf32>
    %18 = arith.mulf %17, %16 : vector<8x256xf32>
    %19 = vector.broadcast %6 : vector<1x256xf32> to vector<8x256xf32>
    %20 = arith.addf %18, %19 : vector<8x256xf32>
    %21 = vector.extract_strided_slice %20 {offsets = [0, 0], sizes = [8, 64], strides = [1, 1]} : vector<8x256xf32> to vector<8x64xf32>
    %22 = vector.extract_strided_slice %20 {offsets = [0, 128], sizes = [8, 64], strides = [1, 1]} : vector<8x256xf32> to vector<8x64xf32>
    %23 = arith.mulf %21, %22 : vector<8x64xf32>
    %24 = vector.broadcast %8 : vector<1x64xf32> to vector<8x64xf32>
    %25 = arith.mulf %23, %24 : vector<8x64xf32>
    %26 = vector.extract_strided_slice %20 {offsets = [0, 192], sizes = [8, 64], strides = [1, 1]} : vector<8x256xf32> to vector<8x64xf32>
    %27 = math.tanh %25 : vector<8x64xf32>
    %28 = arith.mulf %26, %27 : vector<8x64xf32>
    %c0_i32 = arith.constant 0 : i32
    %cst = arith.constant dense<0.000000e+00> : vector<8x256xf32>
    %29 = tpu.matmul %28, %0, %cst {dimension_numbers = #tpu.dot_dimension_numbers<[1], [0], [0], [1], [0, 0, 1, 1], [], []>} : vector<8x64xf32>, vector<64x256xf32>, vector<8x256xf32> -> vector<8x256xf32>
    %c1_i32 = arith.constant 1 : i32
    %30 = arith.addi %c0_i32, %c1_i32 : i32
    %31 = arith.index_cast %30 : i32 to index
    %c0_6 = arith.constant 0 : index
    %c0_7 = arith.constant 0 : index
    %32 = vector.load %arg0[%31, %c0_6, %c0_7] : memref<9x8x1xf32, #tpu.memory_space<vmem>>, vector<1x8x1xf32>
    %33 = vector.shape_cast %32 : vector<1x8x1xf32> to vector<8x1xf32>
    %34 = vector.broadcast %33 : vector<8x1xf32> to vector<8x256xf32>
    %35 = vector.broadcast %4 : vector<1x256xf32> to vector<8x256xf32>
    %36 = arith.mulf %34, %35 : vector<8x256xf32>
    %37 = arith.addf %29, %36 : vector<8x256xf32>
    %38 = vector.broadcast %3 : vector<1x256xf32> to vector<8x256xf32>
    %39 = arith.addf %37, %38 : vector<8x256xf32>
    %40 = math.tanh %39 : vector<8x256xf32>
    %41 = vector.broadcast %5 : vector<1x256xf32> to vector<8x256xf32>
    %42 = arith.mulf %41, %40 : vector<8x256xf32>
    %43 = vector.broadcast %6 : vector<1x256xf32> to vector<8x256xf32>
    %44 = arith.addf %42, %43 : vector<8x256xf32>
    %45 = vector.extract_strided_slice %44 {offsets = [0, 0], sizes = [8, 64], strides = [1, 1]} : vector<8x256xf32> to vector<8x64xf32>
    %46 = vector.extract_strided_slice %44 {offsets = [0, 64], sizes = [8, 64], strides = [1, 1]} : vector<8x256xf32> to vector<8x64xf32>
    %47 = vector.extract_strided_slice %44 {offsets = [0, 128], sizes = [8, 64], strides = [1, 1]} : vector<8x256xf32> to vector<8x64xf32>
    %48 = vector.extract_strided_slice %44 {offsets = [0, 192], sizes = [8, 64], strides = [1, 1]} : vector<8x256xf32> to vector<8x64xf32>
    %49 = arith.mulf %46, %25 : vector<8x64xf32>
    %50 = arith.mulf %45, %47 : vector<8x64xf32>
    %51 = arith.addf %49, %50 : vector<8x64xf32>
    %52 = math.tanh %51 : vector<8x64xf32>
    %53 = arith.mulf %48, %52 : vector<8x64xf32>
    %c1_i32_8 = arith.constant 1 : i32
    %cst_9 = arith.constant dense<0.000000e+00> : vector<8x256xf32>
    %54 = tpu.matmul %53, %0, %cst_9 {dimension_numbers = #tpu.dot_dimension_numbers<[1], [0], [0], [1], [0, 0, 1, 1], [], []>} : vector<8x64xf32>, vector<64x256xf32>, vector<8x256xf32> -> vector<8x256xf32>
    %c1_i32_10 = arith.constant 1 : i32
    %55 = arith.addi %c1_i32_8, %c1_i32_10 : i32
    %56 = arith.index_cast %55 : i32 to index
    %c0_11 = arith.constant 0 : index
    %c0_12 = arith.constant 0 : index
    %57 = vector.load %arg0[%56, %c0_11, %c0_12] : memref<9x8x1xf32, #tpu.memory_space<vmem>>, vector<1x8x1xf32>
    %58 = vector.shape_cast %57 : vector<1x8x1xf32> to vector<8x1xf32>
    %59 = vector.broadcast %58 : vector<8x1xf32> to vector<8x256xf32>
    %60 = vector.broadcast %4 : vector<1x256xf32> to vector<8x256xf32>
    %61 = arith.mulf %59, %60 : vector<8x256xf32>
    %62 = arith.addf %54, %61 : vector<8x256xf32>
    %63 = vector.broadcast %3 : vector<1x256xf32> to vector<8x256xf32>
    %64 = arith.addf %62, %63 : vector<8x256xf32>
    %65 = math.tanh %64 : vector<8x256xf32>
    %66 = vector.broadcast %5 : vector<1x256xf32> to vector<8x256xf32>
    %67 = arith.mulf %66, %65 : vector<8x256xf32>
    %68 = vector.broadcast %6 : vector<1x256xf32> to vector<8x256xf32>
    %69 = arith.addf %67, %68 : vector<8x256xf32>
    %70 = vector.extract_strided_slice %69 {offsets = [0, 0], sizes = [8, 64], strides = [1, 1]} : vector<8x256xf32> to vector<8x64xf32>
    %71 = vector.extract_strided_slice %69 {offsets = [0, 64], sizes = [8, 64], strides = [1, 1]} : vector<8x256xf32> to vector<8x64xf32>
    %72 = vector.extract_strided_slice %69 {offsets = [0, 128], sizes = [8, 64], strides = [1, 1]} : vector<8x256xf32> to vector<8x64xf32>
    %73 = vector.extract_strided_slice %69 {offsets = [0, 192], sizes = [8, 64], strides = [1, 1]} : vector<8x256xf32> to vector<8x64xf32>
    %74 = arith.mulf %71, %51 : vector<8x64xf32>
    %75 = arith.mulf %70, %72 : vector<8x64xf32>
    %76 = arith.addf %74, %75 : vector<8x64xf32>
    %77 = math.tanh %76 : vector<8x64xf32>
    %78 = arith.mulf %73, %77 : vector<8x64xf32>
    %c2_i32 = arith.constant 2 : i32
    %cst_13 = arith.constant dense<0.000000e+00> : vector<8x256xf32>
    %79 = tpu.matmul %78, %0, %cst_13 {dimension_numbers = #tpu.dot_dimension_numbers<[1], [0], [0], [1], [0, 0, 1, 1], [], []>} : vector<8x64xf32>, vector<64x256xf32>, vector<8x256xf32> -> vector<8x256xf32>
    %c1_i32_14 = arith.constant 1 : i32
    %80 = arith.addi %c2_i32, %c1_i32_14 : i32
    %81 = arith.index_cast %80 : i32 to index
    %c0_15 = arith.constant 0 : index
    %c0_16 = arith.constant 0 : index
    %82 = vector.load %arg0[%81, %c0_15, %c0_16] : memref<9x8x1xf32, #tpu.memory_space<vmem>>, vector<1x8x1xf32>
    %83 = vector.shape_cast %82 : vector<1x8x1xf32> to vector<8x1xf32>
    %84 = vector.broadcast %83 : vector<8x1xf32> to vector<8x256xf32>
    %85 = vector.broadcast %4 : vector<1x256xf32> to vector<8x256xf32>
    %86 = arith.mulf %84, %85 : vector<8x256xf32>
    %87 = arith.addf %79, %86 : vector<8x256xf32>
    %88 = vector.broadcast %3 : vector<1x256xf32> to vector<8x256xf32>
    %89 = arith.addf %87, %88 : vector<8x256xf32>
    %90 = math.tanh %89 : vector<8x256xf32>
    %91 = vector.broadcast %5 : vector<1x256xf32> to vector<8x256xf32>
    %92 = arith.mulf %91, %90 : vector<8x256xf32>
    %93 = vector.broadcast %6 : vector<1x256xf32> to vector<8x256xf32>
    %94 = arith.addf %92, %93 : vector<8x256xf32>
    %95 = vector.extract_strided_slice %94 {offsets = [0, 0], sizes = [8, 64], strides = [1, 1]} : vector<8x256xf32> to vector<8x64xf32>
    %96 = vector.extract_strided_slice %94 {offsets = [0, 64], sizes = [8, 64], strides = [1, 1]} : vector<8x256xf32> to vector<8x64xf32>
    %97 = vector.extract_strided_slice %94 {offsets = [0, 128], sizes = [8, 64], strides = [1, 1]} : vector<8x256xf32> to vector<8x64xf32>
    %98 = vector.extract_strided_slice %94 {offsets = [0, 192], sizes = [8, 64], strides = [1, 1]} : vector<8x256xf32> to vector<8x64xf32>
    %99 = arith.mulf %96, %76 : vector<8x64xf32>
    %100 = arith.mulf %95, %97 : vector<8x64xf32>
    %101 = arith.addf %99, %100 : vector<8x64xf32>
    %102 = math.tanh %101 : vector<8x64xf32>
    %103 = arith.mulf %98, %102 : vector<8x64xf32>
    %c3_i32 = arith.constant 3 : i32
    %cst_17 = arith.constant dense<0.000000e+00> : vector<8x256xf32>
    %104 = tpu.matmul %103, %0, %cst_17 {dimension_numbers = #tpu.dot_dimension_numbers<[1], [0], [0], [1], [0, 0, 1, 1], [], []>} : vector<8x64xf32>, vector<64x256xf32>, vector<8x256xf32> -> vector<8x256xf32>
    %c1_i32_18 = arith.constant 1 : i32
    %105 = arith.addi %c3_i32, %c1_i32_18 : i32
    %106 = arith.index_cast %105 : i32 to index
    %c0_19 = arith.constant 0 : index
    %c0_20 = arith.constant 0 : index
    %107 = vector.load %arg0[%106, %c0_19, %c0_20] : memref<9x8x1xf32, #tpu.memory_space<vmem>>, vector<1x8x1xf32>
    %108 = vector.shape_cast %107 : vector<1x8x1xf32> to vector<8x1xf32>
    %109 = vector.broadcast %108 : vector<8x1xf32> to vector<8x256xf32>
    %110 = vector.broadcast %4 : vector<1x256xf32> to vector<8x256xf32>
    %111 = arith.mulf %109, %110 : vector<8x256xf32>
    %112 = arith.addf %104, %111 : vector<8x256xf32>
    %113 = vector.broadcast %3 : vector<1x256xf32> to vector<8x256xf32>
    %114 = arith.addf %112, %113 : vector<8x256xf32>
    %115 = math.tanh %114 : vector<8x256xf32>
    %116 = vector.broadcast %5 : vector<1x256xf32> to vector<8x256xf32>
    %117 = arith.mulf %116, %115 : vector<8x256xf32>
    %118 = vector.broadcast %6 : vector<1x256xf32> to vector<8x256xf32>
    %119 = arith.addf %117, %118 : vector<8x256xf32>
    %120 = vector.extract_strided_slice %119 {offsets = [0, 0], sizes = [8, 64], strides = [1, 1]} : vector<8x256xf32> to vector<8x64xf32>
    %121 = vector.extract_strided_slice %119 {offsets = [0, 64], sizes = [8, 64], strides = [1, 1]} : vector<8x256xf32> to vector<8x64xf32>
    %122 = vector.extract_strided_slice %119 {offsets = [0, 128], sizes = [8, 64], strides = [1, 1]} : vector<8x256xf32> to vector<8x64xf32>
    %123 = vector.extract_strided_slice %119 {offsets = [0, 192], sizes = [8, 64], strides = [1, 1]} : vector<8x256xf32> to vector<8x64xf32>
    %124 = arith.mulf %121, %101 : vector<8x64xf32>
    %125 = arith.mulf %120, %122 : vector<8x64xf32>
    %126 = arith.addf %124, %125 : vector<8x64xf32>
    %127 = math.tanh %126 : vector<8x64xf32>
    %128 = arith.mulf %123, %127 : vector<8x64xf32>
    %c4_i32 = arith.constant 4 : i32
    %cst_21 = arith.constant dense<0.000000e+00> : vector<8x256xf32>
    %129 = tpu.matmul %128, %0, %cst_21 {dimension_numbers = #tpu.dot_dimension_numbers<[1], [0], [0], [1], [0, 0, 1, 1], [], []>} : vector<8x64xf32>, vector<64x256xf32>, vector<8x256xf32> -> vector<8x256xf32>
    %c1_i32_22 = arith.constant 1 : i32
    %130 = arith.addi %c4_i32, %c1_i32_22 : i32
    %131 = arith.index_cast %130 : i32 to index
    %c0_23 = arith.constant 0 : index
    %c0_24 = arith.constant 0 : index
    %132 = vector.load %arg0[%131, %c0_23, %c0_24] : memref<9x8x1xf32, #tpu.memory_space<vmem>>, vector<1x8x1xf32>
    %133 = vector.shape_cast %132 : vector<1x8x1xf32> to vector<8x1xf32>
    %134 = vector.broadcast %133 : vector<8x1xf32> to vector<8x256xf32>
    %135 = vector.broadcast %4 : vector<1x256xf32> to vector<8x256xf32>
    %136 = arith.mulf %134, %135 : vector<8x256xf32>
    %137 = arith.addf %129, %136 : vector<8x256xf32>
    %138 = vector.broadcast %3 : vector<1x256xf32> to vector<8x256xf32>
    %139 = arith.addf %137, %138 : vector<8x256xf32>
    %140 = math.tanh %139 : vector<8x256xf32>
    %141 = vector.broadcast %5 : vector<1x256xf32> to vector<8x256xf32>
    %142 = arith.mulf %141, %140 : vector<8x256xf32>
    %143 = vector.broadcast %6 : vector<1x256xf32> to vector<8x256xf32>
    %144 = arith.addf %142, %143 : vector<8x256xf32>
    %145 = vector.extract_strided_slice %144 {offsets = [0, 0], sizes = [8, 64], strides = [1, 1]} : vector<8x256xf32> to vector<8x64xf32>
    %146 = vector.extract_strided_slice %144 {offsets = [0, 64], sizes = [8, 64], strides = [1, 1]} : vector<8x256xf32> to vector<8x64xf32>
    %147 = vector.extract_strided_slice %144 {offsets = [0, 128], sizes = [8, 64], strides = [1, 1]} : vector<8x256xf32> to vector<8x64xf32>
    %148 = vector.extract_strided_slice %144 {offsets = [0, 192], sizes = [8, 64], strides = [1, 1]} : vector<8x256xf32> to vector<8x64xf32>
    %149 = arith.mulf %146, %126 : vector<8x64xf32>
    %150 = arith.mulf %145, %147 : vector<8x64xf32>
    %151 = arith.addf %149, %150 : vector<8x64xf32>
    %152 = math.tanh %151 : vector<8x64xf32>
    %153 = arith.mulf %148, %152 : vector<8x64xf32>
    %c5_i32 = arith.constant 5 : i32
    %cst_25 = arith.constant dense<0.000000e+00> : vector<8x256xf32>
    %154 = tpu.matmul %153, %0, %cst_25 {dimension_numbers = #tpu.dot_dimension_numbers<[1], [0], [0], [1], [0, 0, 1, 1], [], []>} : vector<8x64xf32>, vector<64x256xf32>, vector<8x256xf32> -> vector<8x256xf32>
    %c1_i32_26 = arith.constant 1 : i32
    %155 = arith.addi %c5_i32, %c1_i32_26 : i32
    %156 = arith.index_cast %155 : i32 to index
    %c0_27 = arith.constant 0 : index
    %c0_28 = arith.constant 0 : index
    %157 = vector.load %arg0[%156, %c0_27, %c0_28] : memref<9x8x1xf32, #tpu.memory_space<vmem>>, vector<1x8x1xf32>
    %158 = vector.shape_cast %157 : vector<1x8x1xf32> to vector<8x1xf32>
    %159 = vector.broadcast %158 : vector<8x1xf32> to vector<8x256xf32>
    %160 = vector.broadcast %4 : vector<1x256xf32> to vector<8x256xf32>
    %161 = arith.mulf %159, %160 : vector<8x256xf32>
    %162 = arith.addf %154, %161 : vector<8x256xf32>
    %163 = vector.broadcast %3 : vector<1x256xf32> to vector<8x256xf32>
    %164 = arith.addf %162, %163 : vector<8x256xf32>
    %165 = math.tanh %164 : vector<8x256xf32>
    %166 = vector.broadcast %5 : vector<1x256xf32> to vector<8x256xf32>
    %167 = arith.mulf %166, %165 : vector<8x256xf32>
    %168 = vector.broadcast %6 : vector<1x256xf32> to vector<8x256xf32>
    %169 = arith.addf %167, %168 : vector<8x256xf32>
    %170 = vector.extract_strided_slice %169 {offsets = [0, 0], sizes = [8, 64], strides = [1, 1]} : vector<8x256xf32> to vector<8x64xf32>
    %171 = vector.extract_strided_slice %169 {offsets = [0, 64], sizes = [8, 64], strides = [1, 1]} : vector<8x256xf32> to vector<8x64xf32>
    %172 = vector.extract_strided_slice %169 {offsets = [0, 128], sizes = [8, 64], strides = [1, 1]} : vector<8x256xf32> to vector<8x64xf32>
    %173 = vector.extract_strided_slice %169 {offsets = [0, 192], sizes = [8, 64], strides = [1, 1]} : vector<8x256xf32> to vector<8x64xf32>
    %174 = arith.mulf %171, %151 : vector<8x64xf32>
    %175 = arith.mulf %170, %172 : vector<8x64xf32>
    %176 = arith.addf %174, %175 : vector<8x64xf32>
    %177 = math.tanh %176 : vector<8x64xf32>
    %178 = arith.mulf %173, %177 : vector<8x64xf32>
    %c6_i32 = arith.constant 6 : i32
    %cst_29 = arith.constant dense<0.000000e+00> : vector<8x256xf32>
    %179 = tpu.matmul %178, %0, %cst_29 {dimension_numbers = #tpu.dot_dimension_numbers<[1], [0], [0], [1], [0, 0, 1, 1], [], []>} : vector<8x64xf32>, vector<64x256xf32>, vector<8x256xf32> -> vector<8x256xf32>
    %c1_i32_30 = arith.constant 1 : i32
    %180 = arith.addi %c6_i32, %c1_i32_30 : i32
    %181 = arith.index_cast %180 : i32 to index
    %c0_31 = arith.constant 0 : index
    %c0_32 = arith.constant 0 : index
    %182 = vector.load %arg0[%181, %c0_31, %c0_32] : memref<9x8x1xf32, #tpu.memory_space<vmem>>, vector<1x8x1xf32>
    %183 = vector.shape_cast %182 : vector<1x8x1xf32> to vector<8x1xf32>
    %184 = vector.broadcast %183 : vector<8x1xf32> to vector<8x256xf32>
    %185 = vector.broadcast %4 : vector<1x256xf32> to vector<8x256xf32>
    %186 = arith.mulf %184, %185 : vector<8x256xf32>
    %187 = arith.addf %179, %186 : vector<8x256xf32>
    %188 = vector.broadcast %3 : vector<1x256xf32> to vector<8x256xf32>
    %189 = arith.addf %187, %188 : vector<8x256xf32>
    %190 = math.tanh %189 : vector<8x256xf32>
    %191 = vector.broadcast %5 : vector<1x256xf32> to vector<8x256xf32>
    %192 = arith.mulf %191, %190 : vector<8x256xf32>
    %193 = vector.broadcast %6 : vector<1x256xf32> to vector<8x256xf32>
    %194 = arith.addf %192, %193 : vector<8x256xf32>
    %195 = vector.extract_strided_slice %194 {offsets = [0, 0], sizes = [8, 64], strides = [1, 1]} : vector<8x256xf32> to vector<8x64xf32>
    %196 = vector.extract_strided_slice %194 {offsets = [0, 64], sizes = [8, 64], strides = [1, 1]} : vector<8x256xf32> to vector<8x64xf32>
    %197 = vector.extract_strided_slice %194 {offsets = [0, 128], sizes = [8, 64], strides = [1, 1]} : vector<8x256xf32> to vector<8x64xf32>
    %198 = vector.extract_strided_slice %194 {offsets = [0, 192], sizes = [8, 64], strides = [1, 1]} : vector<8x256xf32> to vector<8x64xf32>
    %199 = arith.mulf %196, %176 : vector<8x64xf32>
    %200 = arith.mulf %195, %197 : vector<8x64xf32>
    %201 = arith.addf %199, %200 : vector<8x64xf32>
    %202 = math.tanh %201 : vector<8x64xf32>
    %203 = arith.mulf %198, %202 : vector<8x64xf32>
    %c7_i32 = arith.constant 7 : i32
    %cst_33 = arith.constant dense<0.000000e+00> : vector<8x256xf32>
    %204 = tpu.matmul %203, %0, %cst_33 {dimension_numbers = #tpu.dot_dimension_numbers<[1], [0], [0], [1], [0, 0, 1, 1], [], []>} : vector<8x64xf32>, vector<64x256xf32>, vector<8x256xf32> -> vector<8x256xf32>
    %c1_i32_34 = arith.constant 1 : i32
    %205 = arith.addi %c7_i32, %c1_i32_34 : i32
    %206 = arith.index_cast %205 : i32 to index
    %c0_35 = arith.constant 0 : index
    %c0_36 = arith.constant 0 : index
    %207 = vector.load %arg0[%206, %c0_35, %c0_36] : memref<9x8x1xf32, #tpu.memory_space<vmem>>, vector<1x8x1xf32>
    %208 = vector.shape_cast %207 : vector<1x8x1xf32> to vector<8x1xf32>
    %209 = vector.broadcast %208 : vector<8x1xf32> to vector<8x256xf32>
    %210 = vector.broadcast %4 : vector<1x256xf32> to vector<8x256xf32>
    %211 = arith.mulf %209, %210 : vector<8x256xf32>
    %212 = arith.addf %204, %211 : vector<8x256xf32>
    %213 = vector.broadcast %3 : vector<1x256xf32> to vector<8x256xf32>
    %214 = arith.addf %212, %213 : vector<8x256xf32>
    %215 = math.tanh %214 : vector<8x256xf32>
    %216 = vector.broadcast %5 : vector<1x256xf32> to vector<8x256xf32>
    %217 = arith.mulf %216, %215 : vector<8x256xf32>
    %218 = vector.broadcast %6 : vector<1x256xf32> to vector<8x256xf32>
    %219 = arith.addf %217, %218 : vector<8x256xf32>
    %220 = vector.extract_strided_slice %219 {offsets = [0, 0], sizes = [8, 64], strides = [1, 1]} : vector<8x256xf32> to vector<8x64xf32>
    %221 = vector.extract_strided_slice %219 {offsets = [0, 64], sizes = [8, 64], strides = [1, 1]} : vector<8x256xf32> to vector<8x64xf32>
    %222 = vector.extract_strided_slice %219 {offsets = [0, 128], sizes = [8, 64], strides = [1, 1]} : vector<8x256xf32> to vector<8x64xf32>
    %223 = vector.extract_strided_slice %219 {offsets = [0, 192], sizes = [8, 64], strides = [1, 1]} : vector<8x256xf32> to vector<8x64xf32>
    %224 = arith.mulf %221, %201 : vector<8x64xf32>
    %225 = arith.mulf %220, %222 : vector<8x64xf32>
    %226 = arith.addf %224, %225 : vector<8x64xf32>
    %227 = math.tanh %226 : vector<8x64xf32>
    %228 = arith.mulf %223, %227 : vector<8x64xf32>
    %c8_i32 = arith.constant 8 : i32
    %229 = vector.extract_strided_slice %228 {offsets = [0, 0], sizes = [8, 32], strides = [1, 1]} : vector<8x64xf32> to vector<8x32xf32>
    %cst_37 = arith.constant dense<0.000000e+00> : vector<8x128xf32>
    %230 = tpu.matmul %229, %1, %cst_37 {dimension_numbers = #tpu.dot_dimension_numbers<[1], [0], [0], [1], [0, 0, 1, 1], [], []>} : vector<8x32xf32>, vector<32x128xf32>, vector<8x128xf32> -> vector<8x128xf32>
    %231 = vector.broadcast %7 : vector<1x128xf32> to vector<8x128xf32>
    %232 = arith.addf %230, %231 : vector<8x128xf32>
    %cst_38 = arith.constant 0.000000e+00 : f32
    %233 = vector.broadcast %cst_38 : f32 to vector<8x128xf32>
    %234 = arith.maximumf %232, %233 : vector<8x128xf32>
    %c0_39 = arith.constant 0 : index
    %c0_40 = arith.constant 0 : index
    %235 = vector.load %arg2[%c0_39, %c0_40] : memref<8x128xf32, #tpu.memory_space<vmem>>, vector<8x128xf32>
    tpu.vector_store %arg2[%c0_39, %c0_40], %234 {strides = array<i32>} : memref<8x128xf32, #tpu.memory_space<vmem>>, vector<8x128xf32>,
    return
  }
}

</mosaic_0001>

<llo_original>
// kernel: wine_lstm_forward.1
$region0: #{wine_lstm_forward.1}
  #allocation0 [shape = 'u32[]', space=smem, size = 0x4, offset = 0x4, fixed_abs, tag = 'smem constant byte address 0x4 - core index']
  #allocation1 [shape = 'u32[144,128]{1,0:T(1,128)}', space=vmem, size = 0x12000, scoped, tag = 'internal scratch']
  %s0 = inlined_call_operand.vmem [shape: f32[9,8,1], index: 0, kind: input, shape index: {}]
  %s1 = inlined_call_operand.hbm [shape: f32[104,256], index: 1, kind: input, shape index: {}]
  %s2 = inlined_call_operand.vmem [shape: f32[8,128], index: 2, kind: output, shape index: {}]
  %s3 = sld [smem:[#allocation0]]
  $region22: #{wine_lstm_forward.1} parent=0
    _
  %s5 = ssub.s32 1, %s3
  %s6 = scalar_select 0, %s5, %s3
  $region1: #{wine_lstm_forward.1} parent=0
    #allocation2 [shape = 'u8[106496]{0}', space=vmem, size = 0x1a000, scoped, tag = 'input window, operand 1, single buffered']
    #allocation3 [shape = 's32[1]{0}', space=sflag, size = 0x4, scoped, tag = 'scoped memory for wine_lstm_forward.1']
    %7 = vsyncpa [#allocation3], 0
    // Predicated region
    $region2: #{wine_lstm_forward.1} parent=1 // pred_check
      _
    $region3: #{wine_lstm_forward.1} parent=1 // pred_check_branch
      %9 = sbr.rel (0) target = $region5
    $region4: #{wine_lstm_forward.1} parent=1 // pred_region
      _
    $region5: #{wine_lstm_forward.1} parent=1 // pred_fallthru
      _
    // Predicated region
    $region6: #{wine_lstm_forward.1} parent=1 // pred_check
      _
    $region7: #{wine_lstm_forward.1} parent=1 // pred_check_branch
      %11 = sbr.rel (0) target = $region9
    $region8: #{wine_lstm_forward.1} parent=1 // pred_region
      %s13 = ssub.s32 3328, 3328
      %14 = vsyncadd [#allocation3], %s13
      %s15 = sshll.u32 [#allocation2], 4
      %s16 = int_to_ptr.vmem [resolvable:$true] %s15
      %21 = dma.hbm_to_vmem [thread:$0]  %s1, 3328, %s16, [#allocation3], 256, 256, 16
    $region9: #{wine_lstm_forward.1} parent=1 // pred_fallthru
      _
    // Predicated region
    $region10: #{wine_lstm_forward.1} parent=1 // pred_check
      _
    $region11: #{wine_lstm_forward.1} parent=1 // pred_check_branch
      %23 = sbr.rel (0) target = $region13
    $region12: #{wine_lstm_forward.1} parent=1 // pred_region
      %24 = dma.done [#allocation3], 3328
    $region13: #{wine_lstm_forward.1} parent=1 // pred_fallthru
      _
    %v25 = vld [vmem:[#allocation2] sm:$0xff]
    %v26 = vld [vmem:[#allocation2 + $0x8] sm:$0xff]
    %v27 = vld [vmem:[#allocation2 + $0x10] sm:$0xff]
    %v28 = vld [vmem:[#allocation2 + $0x18] sm:$0xff]
    %v29 = vld [vmem:[#allocation2 + $0x20] sm:$0xff]
    %v30 = vld [vmem:[#allocation2 + $0x28] sm:$0xff]
    %v31 = vld [vmem:[#allocation2 + $0x30] sm:$0xff]
    %v32 = vld [vmem:[#allocation2 + $0x38] sm:$0xff]
    %v33 = vld [vmem:[#allocation2 + $0x40] sm:$0xff]
    %v34 = vld [vmem:[#allocation2 + $0x48] sm:$0xff]
    %v35 = vld [vmem:[#allocation2 + $0x50] sm:$0xff]
    %v36 = vld [vmem:[#allocation2 + $0x58] sm:$0xff]
    %v37 = vld [vmem:[#allocation2 + $0x60] sm:$0xff]
    %v38 = vld [vmem:[#allocation2 + $0x68] sm:$0xff]
    %v39 = vld [vmem:[#allocation2 + $0x70] sm:$0xff]
    %v40 = vld [vmem:[#allocation2 + $0x78] sm:$0xff]
    %v41 = vld [vmem:[#allocation2 + $0x80] sm:$0xff]
    %v42 = vld [vmem:[#allocation2 + $0x90] sm:$0xff]
    %v43 = vld [vmem:[#allocation2 + $0xa0] sm:$0xff]
    %v44 = vld [vmem:[#allocation2 + $0xb0] sm:$0xff]
    %v45 = vld [vmem:[#allocation2 + $0xc0] sm:$0xff]
    %v46 = vld [vmem:[#allocation2 + $0xc8] sm:$0xff]
    %v47 = vld [vmem:[%s0] sm:$0xff]
    %49 = vset.pattern.permute.xlu0 0
    %50 = vperm.xlu0 %49, %v47
    %v51 = vpop.permute.xlu0 %50
    %v53 = vlaneseq
    %v54 = vshrl.u32 %v53, 7
    %v55 = vsub.s32 1, %v54
    %v56 = vrot.slane %v45, %v55
    %v57 = vlaneseq
    %v58 = vshrl.u32 %v57, 7
    %v59 = vsub.s32 1, %v58
    %v60 = vrot.slane %v46, %v59
    %v61 = vmul.f32 %v51, %v56
    %v62 = vmul.f32 %v51, %v60
    %v63 = vlaneseq
    %v64 = vshrl.u32 %v63, 7
    %v65 = vsub.s32 0, %v64
    %v66 = vrot.slane %v45, %v65
    %v67 = vlaneseq
    %v68 = vshrl.u32 %v67, 7
    %v69 = vsub.s32 0, %v68
    %v70 = vrot.slane %v46, %v69
    %v71 = vadd.f32 %v61, %v66
    %v72 = vadd.f32 %v62, %v70
    %v73 = vtanh.pop %v71
    %v74 = vtanh.pop %v72
    %v75 = vlaneseq
    %v76 = vshrl.u32 %v75, 7
    %v77 = vsub.s32 2, %v76
    %v78 = vrot.slane %v45, %v77
    %v79 = vlaneseq
    %v80 = vshrl.u32 %v79, 7
    %v81 = vsub.s32 2, %v80
    %v82 = vrot.slane %v46, %v81
    %v83 = vmul.f32 %v78, %v73
    %v84 = vmul.f32 %v82, %v74
    %v85 = vlaneseq
    %v86 = vshrl.u32 %v85, 7
    %v87 = vsub.s32 3, %v86
    %v88 = vrot.slane %v45, %v87
    %v89 = vlaneseq
    %v90 = vshrl.u32 %v89, 7
    %v91 = vsub.s32 3, %v90
    %v92 = vrot.slane %v46, %v91
    %v93 = vadd.f32 %v83, %v88
    %v94 = vadd.f32 %v84, %v92
    %v95 = vmul.f32 %v93, %v94
    %v96 = vlaneseq
    %v97 = vshrl.u32 %v96, 7
    %v98 = vsub.s32 5, %v97
    %v99 = vrot.slane %v45, %v98
    %v100 = vmul.f32 %v95, %v99
    %v101 = vtanh.pop %v100
    %103 = vrot.lane.b32.xlu0 %v101, 64
    %v104 = vpop.permute.xlu0 %103
    %v106 = vmul.f32 %v94, %v104
    %s107 = scalar_lea.vmem %s0, 8
    %v108 = vld [vmem:[%s107] sm:$0xff]
    %110 = vset.pattern.permute.xlu0 0
    %111 = vperm.xlu0 %110, %v108
    %v112 = vpop.permute.xlu0 %111
    %v114 = vmul.f32 %v112, %v56
    %v115 = vmul.f32 %v112, %v60
    %117 = vrot.lane.b32.xlu0 %v106, 64
    %v118 = vpop.permute.xlu0 %117
    %vm119 = vcmask 523264
    %v120 = vsel %vm119, %v118, 0
    %122 = vmatprep.subr.mxu0 0.0
    %123 = vmatpush1.msra.mxu0 0.0
    %124 = vmatprep.subr.mxu0 0.0
    %125 = vmatpush1.msra.mxu0 0.0
    %126 = vmatprep.subr.mxu0 0.0
    %127 = vmatpush1.msra.mxu0 0.0
    %128 = vmatprep.subr.mxu0 0.0
    %129 = vmatpush1.msra.mxu0 0.0
    %130 = vmatprep.subr.mxu0 0.0
    %131 = vmatpush1.msra.mxu0 0.0
    %132 = vmatprep.subr.mxu0 0.0
    %133 = vmatpush1.msra.mxu0 0.0
    %134 = vmatprep.subr.mxu0 0.0
    %135 = vmatpush1.msra.mxu0 0.0
    %136 = vmatprep.subr.mxu0 0.0
    %137 = vmatpush1.msra.mxu0 0.0
    %138 = vmatprep.subr.mxu0 %v40
    %139 = vmatpush1.msra.mxu0 %v39
    %140 = vmatprep.subr.mxu0 %v38
    %141 = vmatpush1.msra.mxu0 %v37
    %142 = vmatprep.subr.mxu0 %v36
    %143 = vmatpush1.msra.mxu0 %v35
    %144 = vmatprep.subr.mxu0 %v34
    %145 = vmatpush1.msra.mxu0 %v33
    %146 = vmatprep.subr.mxu0 %v32
    %147 = vmatpush1.msra.mxu0 %v31
    %148 = vmatprep.subr.mxu0 %v30
    %149 = vmatpush1.msra.mxu0 %v29
    %150 = vmatprep.subr.mxu0 %v28
    %151 = vmatpush1.msra.mxu0 %v27
    %152 = vmatprep.subr.mxu0 %v26
    %153 = vmatpush1.msra.mxu0 %v25
    %154 = vmatprep.subr.mxu0 0.0
    %155 = vmatpush2.msra.mxu0 0.0
    %156 = vmatprep.subr.mxu0 0.0
    %157 = vmatpush2.msra.mxu0 0.0
    %158 = vmatprep.subr.mxu0 0.0
    %159 = vmatpush2.msra.mxu0 0.0
    %160 = vmatprep.subr.mxu0 0.0
    %161 = vmatpush2.msra.mxu0 0.0
    %162 = vmatprep.subr.mxu0 0.0
    %163 = vmatpush2.msra.mxu0 0.0
    %164 = vmatprep.subr.mxu0 0.0
    %165 = vmatpush2.msra.mxu0 0.0
    %166 = vmatprep.subr.mxu0 0.0
    %167 = vmatpush2.msra.mxu0 0.0
    %168 = vmatprep.subr.mxu0 0.0
    %169 = vmatpush2.msra.mxu0 0.0
    %170 = vmatprep.subr.mxu0 0.0
    %171 = vmatpush2.msra.mxu0 0.0
    %172 = vmatprep.subr.mxu0 0.0
    %173 = vmatpush2.msra.mxu0 0.0
    %174 = vmatprep.subr.mxu0 0.0
    %175 = vmatpush2.msra.mxu0 0.0
    %176 = vmatprep.subr.mxu0 0.0
    %177 = vmatpush2.msra.mxu0 0.0
    %178 = vmatprep.subr.mxu0 0.0
    %179 = vmatpush2.msra.mxu0 0.0
    %180 = vmatprep.subr.mxu0 0.0
    %181 = vmatpush2.msra.mxu0 0.0
    %182 = vmatprep.subr.mxu0 0.0
    %183 = vmatpush2.msra.mxu0 0.0
    %184 = vmatprep.subr.mxu0 0.0
    %185 = vmatpush2.msra.mxu0 0.0
    %186 = vmatprep.mubr.f32.mxu0 0.0
    %187 = vmatmul.mubr.f32.gmra.mxu0 %v120
    %v188 = vpop.f32.mrf.mxu0
    %v189 = vadd.f32 %v114, %v188
    %v190 = vpop.f32.mrf.mxu0
    %v191 = vadd.f32 %v115, %v190
    %192 = vdwg.mxu0
    %v193 = vadd.f32 %v189, %v66
    %v194 = vadd.f32 %v191, %v70
    %v195 = vtanh.pop %v193
    %v196 = vtanh.pop %v194
    %v197 = vmul.f32 %v78, %v195
    %v198 = vmul.f32 %v82, %v196
    %v199 = vadd.f32 %v197, %v88
    %v200 = vadd.f32 %v198, %v92
    %202 = vrot.lane.b32.xlu0 %v100, 64
    %v203 = vpop.permute.xlu0 %202
    %v205 = vmul.f32 %v199, %v203
    %v206 = vmul.f32 %v199, %v200
    %208 = vrot.lane.b32.xlu0 %v206, 64
    %v209 = vpop.permute.xlu0 %208
    %v211 = vadd.f32 %v205, %v209
    %v212 = vtanh.pop %v211
    %v213 = vmul.f32 %v200, %v212
    %s214 = scalar_lea.vmem %s0, 16
    %v215 = vld [vmem:[%s214] sm:$0xff]
    %217 = vset.pattern.permute.xlu0 0
    %218 = vperm.xlu0 %217, %v215
    %v219 = vpop.permute.xlu0 %218
    %v221 = vmul.f32 %v219, %v56
    %v222 = vmul.f32 %v219, %v60
    %224 = vrot.lane.b32.xlu0 %v213, 64
    %v225 = vpop.permute.xlu0 %224
    %v226 = vsel %vm119, %v225, 0
    %228 = vmatprep.subr.mxu0 0.0
    %229 = vmatpush1.msra.mxu0 0.0
    %230 = vmatprep.subr.mxu0 0.0
    %231 = vmatpush1.msra.mxu0 0.0
    %232 = vmatprep.subr.mxu0 0.0
    %233 = vmatpush1.msra.mxu0 0.0
    %234 = vmatprep.subr.mxu0 0.0
    %235 = vmatpush1.msra.mxu0 0.0
    %236 = vmatprep.subr.mxu0 0.0
    %237 = vmatpush1.msra.mxu0 0.0
    %238 = vmatprep.subr.mxu0 0.0
    %239 = vmatpush1.msra.mxu0 0.0
    %240 = vmatprep.subr.mxu0 0.0
    %241 = vmatpush1.msra.mxu0 0.0
    %242 = vmatprep.subr.mxu0 0.0
    %243 = vmatpush1.msra.mxu0 0.0
    %244 = vmatprep.subr.mxu0 %v40
    %245 = vmatpush1.msra.mxu0 %v39
    %246 = vmatprep.subr.mxu0 %v38
    %247 = vmatpush1.msra.mxu0 %v37
    %248 = vmatprep.subr.mxu0 %v36
    %249 = vmatpush1.msra.mxu0 %v35
    %250 = vmatprep.subr.mxu0 %v34
    %251 = vmatpush1.msra.mxu0 %v33
    %252 = vmatprep.subr.mxu0 %v32
    %253 = vmatpush1.msra.mxu0 %v31
    %254 = vmatprep.subr.mxu0 %v30
    %255 = vmatpush1.msra.mxu0 %v29
    %256 = vmatprep.subr.mxu0 %v28
    %257 = vmatpush1.msra.mxu0 %v27
    %258 = vmatprep.subr.mxu0 %v26
    %259 = vmatpush1.msra.mxu0 %v25
    %260 = vmatprep.subr.mxu0 0.0
    %261 = vmatpush2.msra.mxu0 0.0
    %262 = vmatprep.subr.mxu0 0.0
    %263 = vmatpush2.msra.mxu0 0.0
    %264 = vmatprep.subr.mxu0 0.0
    %265 = vmatpush2.msra.mxu0 0.0
    %266 = vmatprep.subr.mxu0 0.0
    %267 = vmatpush2.msra.mxu0 0.0
    %268 = vmatprep.subr.mxu0 0.0
    %269 = vmatpush2.msra.mxu0 0.0
    %270 = vmatprep.subr.mxu0 0.0
    %271 = vmatpush2.msra.mxu0 0.0
    %272 = vmatprep.subr.mxu0 0.0
    %273 = vmatpush2.msra.mxu0 0.0
    %274 = vmatprep.subr.mxu0 0.0
    %275 = vmatpush2.msra.mxu0 0.0
    %276 = vmatprep.subr.mxu0 0.0
    %277 = vmatpush2.msra.mxu0 0.0
    %278 = vmatprep.subr.mxu0 0.0
    %279 = vmatpush2.msra.mxu0 0.0
    %280 = vmatprep.subr.mxu0 0.0
    %281 = vmatpush2.msra.mxu0 0.0
    %282 = vmatprep.subr.mxu0 0.0
    %283 = vmatpush2.msra.mxu0 0.0
    %284 = vmatprep.subr.mxu0 0.0
    %285 = vmatpush2.msra.mxu0 0.0
    %286 = vmatprep.subr.mxu0 0.0
    %287 = vmatpush2.msra.mxu0 0.0
    %288 = vmatprep.subr.mxu0 0.0
    %289 = vmatpush2.msra.mxu0 0.0
    %290 = vmatprep.subr.mxu0 0.0
    %291 = vmatpush2.msra.mxu0 0.0
    %292 = vmatprep.mubr.f32.mxu0 0.0
    %293 = vmatmul.mubr.f32.gmra.mxu0 %v226
    %v294 = vpop.f32.mrf.mxu0
    %v295 = vadd.f32 %v221, %v294
    %v296 = vpop.f32.mrf.mxu0
    %v297 = vadd.f32 %v222, %v296
    %298 = vdwg.mxu0
    %v299 = vadd.f32 %v295, %v66
    %v300 = vadd.f32 %v297, %v70
    %v301 = vtanh.pop %v299
    %v302 = vtanh.pop %v300
    %v303 = vmul.f32 %v78, %v301
    %v304 = vmul.f32 %v82, %v302
    %v305 = vadd.f32 %v303, %v88
    %v306 = vadd.f32 %v304, %v92
    %v307 = vmul.f32 %v305, %v211
    %v308 = vmul.f32 %v305, %v306
    %310 = vrot.lane.b32.xlu0 %v308, 64
    %v311 = vpop.permute.xlu0 %310
    %v313 = vadd.f32 %v307, %v311
    %v314 = vtanh.pop %v313
    %v315 = vmul.f32 %v306, %v314
    %s316 = scalar_lea.vmem %s0, 24
    %v317 = vld [vmem:[%s316] sm:$0xff]
    %319 = vset.pattern.permute.xlu0 0
    %320 = vperm.xlu0 %319, %v317
    %v321 = vpop.permute.xlu0 %320
    %v323 = vmul.f32 %v321, %v56
    %v324 = vmul.f32 %v321, %v60
    %326 = vrot.lane.b32.xlu0 %v315, 64
    %v327 = vpop.permute.xlu0 %326
    %v328 = vsel %vm119, %v327, 0
    %330 = vmatprep.subr.mxu0 0.0
    %331 = vmatpush1.msra.mxu0 0.0
    %332 = vmatprep.subr.mxu0 0.0
    %333 = vmatpush1.msra.mxu0 0.0
    %334 = vmatprep.subr.mxu0 0.0
    %335 = vmatpush1.msra.mxu0 0.0
    %336 = vmatprep.subr.mxu0 0.0
    %337 = vmatpush1.msra.mxu0 0.0
    %338 = vmatprep.subr.mxu0 0.0
    %339 = vmatpush1.msra.mxu0 0.0
    %340 = vmatprep.subr.mxu0 0.0
    %341 = vmatpush1.msra.mxu0 0.0
    %342 = vmatprep.subr.mxu0 0.0
    %343 = vmatpush1.msra.mxu0 0.0
    %344 = vmatprep.subr.mxu0 0.0
    %345 = vmatpush1.msra.mxu0 0.0
    %346 = vmatprep.subr.mxu0 %v40
    %347 = vmatpush1.msra.mxu0 %v39
    %348 = vmatprep.subr.mxu0 %v38
    %349 = vmatpush1.msra.mxu0 %v37
    %350 = vmatprep.subr.mxu0 %v36
    %351 = vmatpush1.msra.mxu0 %v35
    %352 = vmatprep.subr.mxu0 %v34
    %353 = vmatpush1.msra.mxu0 %v33
    %354 = vmatprep.subr.mxu0 %v32
    %355 = vmatpush1.msra.mxu0 %v31
    %356 = vmatprep.subr.mxu0 %v30
    %357 = vmatpush1.msra.mxu0 %v29
    %358 = vmatprep.subr.mxu0 %v28
    %359 = vmatpush1.msra.mxu0 %v27
    %360 = vmatprep.subr.mxu0 %v26
    %361 = vmatpush1.msra.mxu0 %v25
    %362 = vmatprep.subr.mxu0 0.0
    %363 = vmatpush2.msra.mxu0 0.0
    %364 = vmatprep.subr.mxu0 0.0
    %365 = vmatpush2.msra.mxu0 0.0
    %366 = vmatprep.subr.mxu0 0.0
    %367 = vmatpush2.msra.mxu0 0.0
    %368 = vmatprep.subr.mxu0 0.0
    %369 = vmatpush2.msra.mxu0 0.0
    %370 = vmatprep.subr.mxu0 0.0
    %371 = vmatpush2.msra.mxu0 0.0
    %372 = vmatprep.subr.mxu0 0.0
    %373 = vmatpush2.msra.mxu0 0.0
    %374 = vmatprep.subr.mxu0 0.0
    %375 = vmatpush2.msra.mxu0 0.0
    %376 = vmatprep.subr.mxu0 0.0
    %377 = vmatpush2.msra.mxu0 0.0
    %378 = vmatprep.subr.mxu0 0.0
    %379 = vmatpush2.msra.mxu0 0.0
    %380 = vmatprep.subr.mxu0 0.0
    %381 = vmatpush2.msra.mxu0 0.0
    %382 = vmatprep.subr.mxu0 0.0
    %383 = vmatpush2.msra.mxu0 0.0
    %384 = vmatprep.subr.mxu0 0.0
    %385 = vmatpush2.msra.mxu0 0.0
    %386 = vmatprep.subr.mxu0 0.0
    %387 = vmatpush2.msra.mxu0 0.0
    %388 = vmatprep.subr.mxu0 0.0
    %389 = vmatpush2.msra.mxu0 0.0
    %390 = vmatprep.subr.mxu0 0.0
    %391 = vmatpush2.msra.mxu0 0.0
    %392 = vmatprep.subr.mxu0 0.0
    %393 = vmatpush2.msra.mxu0 0.0
    %394 = vmatprep.mubr.f32.mxu0 0.0
    %395 = vmatmul.mubr.f32.gmra.mxu0 %v328
    %v396 = vpop.f32.mrf.mxu0
    %v397 = vadd.f32 %v323, %v396
    %v398 = vpop.f32.mrf.mxu0
    %v399 = vadd.f32 %v324, %v398
    %400 = vdwg.mxu0
    %v401 = vadd.f32 %v397, %v66
    %v402 = vadd.f32 %v399, %v70
    %v403 = vtanh.pop %v401
    %v404 = vtanh.pop %v402
    %v405 = vmul.f32 %v78, %v403
    %v406 = vmul.f32 %v82, %v404
    %v407 = vadd.f32 %v405, %v88
    %v408 = vadd.f32 %v406, %v92
    %v409 = vmul.f32 %v407, %v313
    %v410 = vmul.f32 %v407, %v408
    %412 = vrot.lane.b32.xlu0 %v410, 64
    %v413 = vpop.permute.xlu0 %412
    %v415 = vadd.f32 %v409, %v413
    %v416 = vtanh.pop %v415
    %v417 = vmul.f32 %v408, %v416
    %s418 = scalar_lea.vmem %s0, 32
    %v419 = vld [vmem:[%s418] sm:$0xff]
    %421 = vset.pattern.permute.xlu0 0
    %422 = vperm.xlu0 %421, %v419
    %v423 = vpop.permute.xlu0 %422
    %v425 = vmul.f32 %v423, %v56
    %v426 = vmul.f32 %v423, %v60
    %428 = vrot.lane.b32.xlu0 %v417, 64
    %v429 = vpop.permute.xlu0 %428
    %v430 = vsel %vm119, %v429, 0
    %432 = vmatprep.subr.mxu0 0.0
    %433 = vmatpush1.msra.mxu0 0.0
    %434 = vmatprep.subr.mxu0 0.0
    %435 = vmatpush1.msra.mxu0 0.0
    %436 = vmatprep.subr.mxu0 0.0
    %437 = vmatpush1.msra.mxu0 0.0
    %438 = vmatprep.subr.mxu0 0.0
    %439 = vmatpush1.msra.mxu0 0.0
    %440 = vmatprep.subr.mxu0 0.0
    %441 = vmatpush1.msra.mxu0 0.0
    %442 = vmatprep.subr.mxu0 0.0
    %443 = vmatpush1.msra.mxu0 0.0
    %444 = vmatprep.subr.mxu0 0.0
    %445 = vmatpush1.msra.mxu0 0.0
    %446 = vmatprep.subr.mxu0 0.0
    %447 = vmatpush1.msra.mxu0 0.0
    %448 = vmatprep.subr.mxu0 %v40
    %449 = vmatpush1.msra.mxu0 %v39
    %450 = vmatprep.subr.mxu0 %v38
    %451 = vmatpush1.msra.mxu0 %v37
    %452 = vmatprep.subr.mxu0 %v36
    %453 = vmatpush1.msra.mxu0 %v35
    %454 = vmatprep.subr.mxu0 %v34
    %455 = vmatpush1.msra.mxu0 %v33
    %456 = vmatprep.subr.mxu0 %v32
    %457 = vmatpush1.msra.mxu0 %v31
    %458 = vmatprep.subr.mxu0 %v30
    %459 = vmatpush1.msra.mxu0 %v29
    %460 = vmatprep.subr.mxu0 %v28
    %461 = vmatpush1.msra.mxu0 %v27
    %462 = vmatprep.subr.mxu0 %v26
    %463 = vmatpush1.msra.mxu0 %v25
    %464 = vmatprep.subr.mxu0 0.0
    %465 = vmatpush2.msra.mxu0 0.0
    %466 = vmatprep.subr.mxu0 0.0
    %467 = vmatpush2.msra.mxu0 0.0
    %468 = vmatprep.subr.mxu0 0.0
    %469 = vmatpush2.msra.mxu0 0.0
    %470 = vmatprep.subr.mxu0 0.0
    %471 = vmatpush2.msra.mxu0 0.0
    %472 = vmatprep.subr.mxu0 0.0
    %473 = vmatpush2.msra.mxu0 0.0
    %474 = vmatprep.subr.mxu0 0.0
    %475 = vmatpush2.msra.mxu0 0.0
    %476 = vmatprep.subr.mxu0 0.0
    %477 = vmatpush2.msra.mxu0 0.0
    %478 = vmatprep.subr.mxu0 0.0
    %479 = vmatpush2.msra.mxu0 0.0
    %480 = vmatprep.subr.mxu0 0.0
    %481 = vmatpush2.msra.mxu0 0.0
    %482 = vmatprep.subr.mxu0 0.0
    %483 = vmatpush2.msra.mxu0 0.0
    %484 = vmatprep.subr.mxu0 0.0
    %485 = vmatpush2.msra.mxu0 0.0
    %486 = vmatprep.subr.mxu0 0.0
    %487 = vmatpush2.msra.mxu0 0.0
    %488 = vmatprep.subr.mxu0 0.0
    %489 = vmatpush2.msra.mxu0 0.0
    %490 = vmatprep.subr.mxu0 0.0
    %491 = vmatpush2.msra.mxu0 0.0
    %492 = vmatprep.subr.mxu0 0.0
    %493 = vmatpush2.msra.mxu0 0.0
    %494 = vmatprep.subr.mxu0 0.0
    %495 = vmatpush2.msra.mxu0 0.0
    %496 = vmatprep.mubr.f32.mxu0 0.0
    %497 = vmatmul.mubr.f32.gmra.mxu0 %v430
    %v498 = vpop.f32.mrf.mxu0
    %v499 = vadd.f32 %v425, %v498
    %v500 = vpop.f32.mrf.mxu0
    %v501 = vadd.f32 %v426, %v500
    %502 = vdwg.mxu0
    %v503 = vadd.f32 %v499, %v66
    %v504 = vadd.f32 %v501, %v70
    %v505 = vtanh.pop %v503
    %v506 = vtanh.pop %v504
    %v507 = vmul.f32 %v78, %v505
    %v508 = vmul.f32 %v82, %v506
    %v509 = vadd.f32 %v507, %v88
    %v510 = vadd.f32 %v508, %v92
    %v511 = vmul.f32 %v509, %v415
    %v512 = vmul.f32 %v509, %v510
    %514 = vrot.lane.b32.xlu0 %v512, 64
    %v515 = vpop.permute.xlu0 %514
    %v517 = vadd.f32 %v511, %v515
    %v518 = vtanh.pop %v517
    %v519 = vmul.f32 %v510, %v518
    %s520 = scalar_lea.vmem %s0, 40
    %v521 = vld [vmem:[%s520] sm:$0xff]
    %523 = vset.pattern.permute.xlu0 0
    %524 = vperm.xlu0 %523, %v521
    %v525 = vpop.permute.xlu0 %524
    %v527 = vmul.f32 %v525, %v56
    %v528 = vmul.f32 %v525, %v60
    %530 = vrot.lane.b32.xlu0 %v519, 64
    %v531 = vpop.permute.xlu0 %530
    %v532 = vsel %vm119, %v531, 0
    %534 = vmatprep.subr.mxu0 0.0
    %535 = vmatpush1.msra.mxu0 0.0
    %536 = vmatprep.subr.mxu0 0.0
    %537 = vmatpush1.msra.mxu0 0.0
    %538 = vmatprep.subr.mxu0 0.0
    %539 = vmatpush1.msra.mxu0 0.0
    %540 = vmatprep.subr.mxu0 0.0
    %541 = vmatpush1.msra.mxu0 0.0
    %542 = vmatprep.subr.mxu0 0.0
    %543 = vmatpush1.msra.mxu0 0.0
    %544 = vmatprep.subr.mxu0 0.0
    %545 = vmatpush1.msra.mxu0 0.0
    %546 = vmatprep.subr.mxu0 0.0
    %547 = vmatpush1.msra.mxu0 0.0
    %548 = vmatprep.subr.mxu0 0.0
    %549 = vmatpush1.msra.mxu0 0.0
    %550 = vmatprep.subr.mxu0 %v40
    %551 = vmatpush1.msra.mxu0 %v39
    %552 = vmatprep.subr.mxu0 %v38
    %553 = vmatpush1.msra.mxu0 %v37
    %554 = vmatprep.subr.mxu0 %v36
    %555 = vmatpush1.msra.mxu0 %v35
    %556 = vmatprep.subr.mxu0 %v34
    %557 = vmatpush1.msra.mxu0 %v33
    %558 = vmatprep.subr.mxu0 %v32
    %559 = vmatpush1.msra.mxu0 %v31
    %560 = vmatprep.subr.mxu0 %v30
    %561 = vmatpush1.msra.mxu0 %v29
    %562 = vmatprep.subr.mxu0 %v28
    %563 = vmatpush1.msra.mxu0 %v27
    %564 = vmatprep.subr.mxu0 %v26
    %565 = vmatpush1.msra.mxu0 %v25
    %566 = vmatprep.subr.mxu0 0.0
    %567 = vmatpush2.msra.mxu0 0.0
    %568 = vmatprep.subr.mxu0 0.0
    %569 = vmatpush2.msra.mxu0 0.0
    %570 = vmatprep.subr.mxu0 0.0
    %571 = vmatpush2.msra.mxu0 0.0
    %572 = vmatprep.subr.mxu0 0.0
    %573 = vmatpush2.msra.mxu0 0.0
    %574 = vmatprep.subr.mxu0 0.0
    %575 = vmatpush2.msra.mxu0 0.0
    %576 = vmatprep.subr.mxu0 0.0
    %577 = vmatpush2.msra.mxu0 0.0
    %578 = vmatprep.subr.mxu0 0.0
    %579 = vmatpush2.msra.mxu0 0.0
    %580 = vmatprep.subr.mxu0 0.0
    %581 = vmatpush2.msra.mxu0 0.0
    %582 = vmatprep.subr.mxu0 0.0
    %583 = vmatpush2.msra.mxu0 0.0
    %584 = vmatprep.subr.mxu0 0.0
    %585 = vmatpush2.msra.mxu0 0.0
    %586 = vmatprep.subr.mxu0 0.0
    %587 = vmatpush2.msra.mxu0 0.0
    %588 = vmatprep.subr.mxu0 0.0
    %589 = vmatpush2.msra.mxu0 0.0
    %590 = vmatprep.subr.mxu0 0.0
    %591 = vmatpush2.msra.mxu0 0.0
    %592 = vmatprep.subr.mxu0 0.0
    %593 = vmatpush2.msra.mxu0 0.0
    %594 = vmatprep.subr.mxu0 0.0
    %595 = vmatpush2.msra.mxu0 0.0
    %596 = vmatprep.subr.mxu0 0.0
    %597 = vmatpush2.msra.mxu0 0.0
    %598 = vmatprep.mubr.f32.mxu0 0.0
    %599 = vmatmul.mubr.f32.gmra.mxu0 %v532
    %v600 = vpop.f32.mrf.mxu0
    %v601 = vadd.f32 %v527, %v600
    %v602 = vpop.f32.mrf.mxu0
    %v603 = vadd.f32 %v528, %v602
    %604 = vdwg.mxu0
    %v605 = vadd.f32 %v601, %v66
    %v606 = vadd.f32 %v603, %v70
    %v607 = vtanh.pop %v605
    %v608 = vtanh.pop %v606
    %v609 = vmul.f32 %v78, %v607
    %v610 = vmul.f32 %v82, %v608
    %v611 = vadd.f32 %v609, %v88
    %v612 = vadd.f32 %v610, %v92
    %v613 = vmul.f32 %v611, %v517
    %v614 = vmul.f32 %v611, %v612
    %616 = vrot.lane.b32.xlu0 %v614, 64
    %v617 = vpop.permute.xlu0 %616
    %v619 = vadd.f32 %v613, %v617
    %v620 = vtanh.pop %v619
    %v621 = vmul.f32 %v612, %v620
    %s622 = scalar_lea.vmem %s0, 48
    %v623 = vld [vmem:[%s622] sm:$0xff]
    %625 = vset.pattern.permute.xlu0 0
    %626 = vperm.xlu0 %625, %v623
    %v627 = vpop.permute.xlu0 %626
    %v629 = vmul.f32 %v627, %v56
    %v630 = vmul.f32 %v627, %v60
    %632 = vrot.lane.b32.xlu0 %v621, 64
    %v633 = vpop.permute.xlu0 %632
    %v634 = vsel %vm119, %v633, 0
    %636 = vmatprep.subr.mxu0 0.0
    %637 = vmatpush1.msra.mxu0 0.0
    %638 = vmatprep.subr.mxu0 0.0
    %639 = vmatpush1.msra.mxu0 0.0
    %640 = vmatprep.subr.mxu0 0.0
    %641 = vmatpush1.msra.mxu0 0.0
    %642 = vmatprep.subr.mxu0 0.0
    %643 = vmatpush1.msra.mxu0 0.0
    %644 = vmatprep.subr.mxu0 0.0
    %645 = vmatpush1.msra.mxu0 0.0
    %646 = vmatprep.subr.mxu0 0.0
    %647 = vmatpush1.msra.mxu0 0.0
    %648 = vmatprep.subr.mxu0 0.0
    %649 = vmatpush1.msra.mxu0 0.0
    %650 = vmatprep.subr.mxu0 0.0
    %651 = vmatpush1.msra.mxu0 0.0
    %652 = vmatprep.subr.mxu0 %v40
    %653 = vmatpush1.msra.mxu0 %v39
    %654 = vmatprep.subr.mxu0 %v38
    %655 = vmatpush1.msra.mxu0 %v37
    %656 = vmatprep.subr.mxu0 %v36
    %657 = vmatpush1.msra.mxu0 %v35
    %658 = vmatprep.subr.mxu0 %v34
    %659 = vmatpush1.msra.mxu0 %v33
    %660 = vmatprep.subr.mxu0 %v32
    %661 = vmatpush1.msra.mxu0 %v31
    %662 = vmatprep.subr.mxu0 %v30
    %663 = vmatpush1.msra.mxu0 %v29
    %664 = vmatprep.subr.mxu0 %v28
    %665 = vmatpush1.msra.mxu0 %v27
    %666 = vmatprep.subr.mxu0 %v26
    %667 = vmatpush1.msra.mxu0 %v25
    %668 = vmatprep.subr.mxu0 0.0
    %669 = vmatpush2.msra.mxu0 0.0
    %670 = vmatprep.subr.mxu0 0.0
    %671 = vmatpush2.msra.mxu0 0.0
    %672 = vmatprep.subr.mxu0 0.0
    %673 = vmatpush2.msra.mxu0 0.0
    %674 = vmatprep.subr.mxu0 0.0
    %675 = vmatpush2.msra.mxu0 0.0
    %676 = vmatprep.subr.mxu0 0.0
    %677 = vmatpush2.msra.mxu0 0.0
    %678 = vmatprep.subr.mxu0 0.0
    %679 = vmatpush2.msra.mxu0 0.0
    %680 = vmatprep.subr.mxu0 0.0
    %681 = vmatpush2.msra.mxu0 0.0
    %682 = vmatprep.subr.mxu0 0.0
    %683 = vmatpush2.msra.mxu0 0.0
    %684 = vmatprep.subr.mxu0 0.0
    %685 = vmatpush2.msra.mxu0 0.0
    %686 = vmatprep.subr.mxu0 0.0
    %687 = vmatpush2.msra.mxu0 0.0
    %688 = vmatprep.subr.mxu0 0.0
    %689 = vmatpush2.msra.mxu0 0.0
    %690 = vmatprep.subr.mxu0 0.0
    %691 = vmatpush2.msra.mxu0 0.0
    %692 = vmatprep.subr.mxu0 0.0
    %693 = vmatpush2.msra.mxu0 0.0
    %694 = vmatprep.subr.mxu0 0.0
    %695 = vmatpush2.msra.mxu0 0.0
    %696 = vmatprep.subr.mxu0 0.0
    %697 = vmatpush2.msra.mxu0 0.0
    %698 = vmatprep.subr.mxu0 0.0
    %699 = vmatpush2.msra.mxu0 0.0
    %700 = vmatprep.mubr.f32.mxu0 0.0
    %701 = vmatmul.mubr.f32.gmra.mxu0 %v634
    %v702 = vpop.f32.mrf.mxu0
    %v703 = vadd.f32 %v629, %v702
    %v704 = vpop.f32.mrf.mxu0
    %v705 = vadd.f32 %v630, %v704
    %706 = vdwg.mxu0
    %v707 = vadd.f32 %v703, %v66
    %v708 = vadd.f32 %v705, %v70
    %v709 = vtanh.pop %v707
    %v710 = vtanh.pop %v708
    %v711 = vmul.f32 %v78, %v709
    %v712 = vmul.f32 %v82, %v710
    %v713 = vadd.f32 %v711, %v88
    %v714 = vadd.f32 %v712, %v92
    %v715 = vmul.f32 %v713, %v619
    %v716 = vmul.f32 %v713, %v714
    %718 = vrot.lane.b32.xlu0 %v716, 64
    %v719 = vpop.permute.xlu0 %718
    %v721 = vadd.f32 %v715, %v719
    %v722 = vtanh.pop %v721
    %v723 = vmul.f32 %v714, %v722
    %s724 = scalar_lea.vmem %s0, 56
    %v725 = vld [vmem:[%s724] sm:$0xff]
    %727 = vset.pattern.permute.xlu0 0
    %728 = vperm.xlu0 %727, %v725
    %v729 = vpop.permute.xlu0 %728
    %v731 = vmul.f32 %v729, %v56
    %v732 = vmul.f32 %v729, %v60
    %734 = vrot.lane.b32.xlu0 %v723, 64
    %v735 = vpop.permute.xlu0 %734
    %v736 = vsel %vm119, %v735, 0
    %738 = vmatprep.subr.mxu0 0.0
    %739 = vmatpush1.msra.mxu0 0.0
    %740 = vmatprep.subr.mxu0 0.0
    %741 = vmatpush1.msra.mxu0 0.0
    %742 = vmatprep.subr.mxu0 0.0
    %743 = vmatpush1.msra.mxu0 0.0
    %744 = vmatprep.subr.mxu0 0.0
    %745 = vmatpush1.msra.mxu0 0.0
    %746 = vmatprep.subr.mxu0 0.0
    %747 = vmatpush1.msra.mxu0 0.0
    %748 = vmatprep.subr.mxu0 0.0
    %749 = vmatpush1.msra.mxu0 0.0
    %750 = vmatprep.subr.mxu0 0.0
    %751 = vmatpush1.msra.mxu0 0.0
    %752 = vmatprep.subr.mxu0 0.0
    %753 = vmatpush1.msra.mxu0 0.0
    %754 = vmatprep.subr.mxu0 %v40
    %755 = vmatpush1.msra.mxu0 %v39
    %756 = vmatprep.subr.mxu0 %v38
    %757 = vmatpush1.msra.mxu0 %v37
    %758 = vmatprep.subr.mxu0 %v36
    %759 = vmatpush1.msra.mxu0 %v35
    %760 = vmatprep.subr.mxu0 %v34
    %761 = vmatpush1.msra.mxu0 %v33
    %762 = vmatprep.subr.mxu0 %v32
    %763 = vmatpush1.msra.mxu0 %v31
    %764 = vmatprep.subr.mxu0 %v30
    %765 = vmatpush1.msra.mxu0 %v29
    %766 = vmatprep.subr.mxu0 %v28
    %767 = vmatpush1.msra.mxu0 %v27
    %768 = vmatprep.subr.mxu0 %v26
    %769 = vmatpush1.msra.mxu0 %v25
    %770 = vmatprep.subr.mxu0 0.0
    %771 = vmatpush2.msra.mxu0 0.0
    %772 = vmatprep.subr.mxu0 0.0
    %773 = vmatpush2.msra.mxu0 0.0
    %774 = vmatprep.subr.mxu0 0.0
    %775 = vmatpush2.msra.mxu0 0.0
    %776 = vmatprep.subr.mxu0 0.0
    %777 = vmatpush2.msra.mxu0 0.0
    %778 = vmatprep.subr.mxu0 0.0
    %779 = vmatpush2.msra.mxu0 0.0
    %780 = vmatprep.subr.mxu0 0.0
    %781 = vmatpush2.msra.mxu0 0.0
    %782 = vmatprep.subr.mxu0 0.0
    %783 = vmatpush2.msra.mxu0 0.0
    %784 = vmatprep.subr.mxu0 0.0
    %785 = vmatpush2.msra.mxu0 0.0
    %786 = vmatprep.subr.mxu0 0.0
    %787 = vmatpush2.msra.mxu0 0.0
    %788 = vmatprep.subr.mxu0 0.0
    %789 = vmatpush2.msra.mxu0 0.0
    %790 = vmatprep.subr.mxu0 0.0
    %791 = vmatpush2.msra.mxu0 0.0
    %792 = vmatprep.subr.mxu0 0.0
    %793 = vmatpush2.msra.mxu0 0.0
    %794 = vmatprep.subr.mxu0 0.0
    %795 = vmatpush2.msra.mxu0 0.0
    %796 = vmatprep.subr.mxu0 0.0
    %797 = vmatpush2.msra.mxu0 0.0
    %798 = vmatprep.subr.mxu0 0.0
    %799 = vmatpush2.msra.mxu0 0.0
    %800 = vmatprep.subr.mxu0 0.0
    %801 = vmatpush2.msra.mxu0 0.0
    %802 = vmatprep.mubr.f32.mxu0 0.0
    %803 = vmatmul.mubr.f32.gmra.mxu0 %v736
    %v804 = vpop.f32.mrf.mxu0
    %v805 = vadd.f32 %v731, %v804
    %v806 = vpop.f32.mrf.mxu0
    %v807 = vadd.f32 %v732, %v806
    %808 = vdwg.mxu0
    %v809 = vadd.f32 %v805, %v66
    %v810 = vadd.f32 %v807, %v70
    %v811 = vtanh.pop %v809
    %v812 = vtanh.pop %v810
    %v813 = vmul.f32 %v78, %v811
    %v814 = vmul.f32 %v82, %v812
    %v815 = vadd.f32 %v813, %v88
    %v816 = vadd.f32 %v814, %v92
    %v817 = vmul.f32 %v815, %v721
    %v818 = vmul.f32 %v815, %v816
    %820 = vrot.lane.b32.xlu0 %v818, 64
    %v821 = vpop.permute.xlu0 %820
    %v823 = vadd.f32 %v817, %v821
    %v824 = vtanh.pop %v823
    %v825 = vmul.f32 %v816, %v824
    %s826 = scalar_lea.vmem %s0, 64
    %v827 = vld [vmem:[%s826] sm:$0xff]
    %829 = vset.pattern.permute.xlu0 0
    %830 = vperm.xlu0 %829, %v827
    %v831 = vpop.permute.xlu0 %830
    %v833 = vmul.f32 %v831, %v56
    %v834 = vmul.f32 %v831, %v60
    %836 = vrot.lane.b32.xlu0 %v825, 64
    %v837 = vpop.permute.xlu0 %836
    %v838 = vsel %vm119, %v837, 0
    %840 = vmatprep.subr.mxu0 0.0
    %841 = vmatpush1.msra.mxu0 0.0
    %842 = vmatprep.subr.mxu0 0.0
    %843 = vmatpush1.msra.mxu0 0.0
    %844 = vmatprep.subr.mxu0 0.0
    %845 = vmatpush1.msra.mxu0 0.0
    %846 = vmatprep.subr.mxu0 0.0
    %847 = vmatpush1.msra.mxu0 0.0
    %848 = vmatprep.subr.mxu0 0.0
    %849 = vmatpush1.msra.mxu0 0.0
    %850 = vmatprep.subr.mxu0 0.0
    %851 = vmatpush1.msra.mxu0 0.0
    %852 = vmatprep.subr.mxu0 0.0
    %853 = vmatpush1.msra.mxu0 0.0
    %854 = vmatprep.subr.mxu0 0.0
    %855 = vmatpush1.msra.mxu0 0.0
    %856 = vmatprep.subr.mxu0 %v40
    %857 = vmatpush1.msra.mxu0 %v39
    %858 = vmatprep.subr.mxu0 %v38
    %859 = vmatpush1.msra.mxu0 %v37
    %860 = vmatprep.subr.mxu0 %v36
    %861 = vmatpush1.msra.mxu0 %v35
    %862 = vmatprep.subr.mxu0 %v34
    %863 = vmatpush1.msra.mxu0 %v33
    %864 = vmatprep.subr.mxu0 %v32
    %865 = vmatpush1.msra.mxu0 %v31
    %866 = vmatprep.subr.mxu0 %v30
    %867 = vmatpush1.msra.mxu0 %v29
    %868 = vmatprep.subr.mxu0 %v28
    %869 = vmatpush1.msra.mxu0 %v27
    %870 = vmatprep.subr.mxu0 %v26
    %871 = vmatpush1.msra.mxu0 %v25
    %872 = vmatprep.subr.mxu0 0.0
    %873 = vmatpush2.msra.mxu0 0.0
    %874 = vmatprep.subr.mxu0 0.0
    %875 = vmatpush2.msra.mxu0 0.0
    %876 = vmatprep.subr.mxu0 0.0
    %877 = vmatpush2.msra.mxu0 0.0
    %878 = vmatprep.subr.mxu0 0.0
    %879 = vmatpush2.msra.mxu0 0.0
    %880 = vmatprep.subr.mxu0 0.0
    %881 = vmatpush2.msra.mxu0 0.0
    %882 = vmatprep.subr.mxu0 0.0
    %883 = vmatpush2.msra.mxu0 0.0
    %884 = vmatprep.subr.mxu0 0.0
    %885 = vmatpush2.msra.mxu0 0.0
    %886 = vmatprep.subr.mxu0 0.0
    %887 = vmatpush2.msra.mxu0 0.0
    %888 = vmatprep.subr.mxu0 0.0
    %889 = vmatpush2.msra.mxu0 0.0
    %890 = vmatprep.subr.mxu0 0.0
    %891 = vmatpush2.msra.mxu0 0.0
    %892 = vmatprep.subr.mxu0 0.0
    %893 = vmatpush2.msra.mxu0 0.0
    %894 = vmatprep.subr.mxu0 0.0
    %895 = vmatpush2.msra.mxu0 0.0
    %896 = vmatprep.subr.mxu0 0.0
    %897 = vmatpush2.msra.mxu0 0.0
    %898 = vmatprep.subr.mxu0 0.0
    %899 = vmatpush2.msra.mxu0 0.0
    %900 = vmatprep.subr.mxu0 0.0
    %901 = vmatpush2.msra.mxu0 0.0
    %902 = vmatprep.subr.mxu0 0.0
    %903 = vmatpush2.msra.mxu0 0.0
    %904 = vmatprep.mubr.f32.mxu0 0.0
    %905 = vmatmul.mubr.f32.gmra.mxu0 %v838
    %v906 = vpop.f32.mrf.mxu0
    %v907 = vadd.f32 %v833, %v906
    %v908 = vpop.f32.mrf.mxu0
    %v909 = vadd.f32 %v834, %v908
    %910 = vdwg.mxu0
    %v911 = vadd.f32 %v907, %v66
    %v912 = vadd.f32 %v909, %v70
    %v913 = vtanh.pop %v911
    %v914 = vtanh.pop %v912
    %v915 = vmul.f32 %v78, %v913
    %v916 = vmul.f32 %v82, %v914
    %v917 = vadd.f32 %v915, %v88
    %v918 = vadd.f32 %v916, %v92
    %v919 = vmul.f32 %v917, %v823
    %v920 = vmul.f32 %v917, %v918
    %922 = vrot.lane.b32.xlu0 %v920, 64
    %v923 = vpop.permute.xlu0 %922
    %v925 = vadd.f32 %v919, %v923
    %v926 = vtanh.pop %v925
    %v927 = vmul.f32 %v918, %v926
    %v928 = vlaneseq
    %v929 = vshrl.u32 %v928, 7
    %v930 = vsub.s32 4, %v929
    %v931 = vrot.slane %v45, %v930
    %933 = vrot.lane.b32.xlu0 %v927, 64
    %v934 = vpop.permute.xlu0 %933
    %vm935 = vcmask 261120
    %v936 = vsel %vm935, %v934, 0
    %938 = vmatprep.subr.mxu0 0.0
    %939 = vmatpush1.msra.mxu0 0.0
    %940 = vmatprep.subr.mxu0 0.0
    %941 = vmatpush1.msra.mxu0 0.0
    %942 = vmatprep.subr.mxu0 0.0
    %943 = vmatpush1.msra.mxu0 0.0
    %944 = vmatprep.subr.mxu0 0.0
    %945 = vmatpush1.msra.mxu0 0.0
    %946 = vmatprep.subr.mxu0 0.0
    %947 = vmatpush1.msra.mxu0 0.0
    %948 = vmatprep.subr.mxu0 0.0
    %949 = vmatpush1.msra.mxu0 0.0
    %950 = vmatprep.subr.mxu0 0.0
    %951 = vmatpush1.msra.mxu0 0.0
    %952 = vmatprep.subr.mxu0 0.0
    %953 = vmatpush1.msra.mxu0 0.0
    %954 = vmatprep.subr.mxu0 0.0
    %955 = vmatpush1.msra.mxu0 0.0
    %956 = vmatprep.subr.mxu0 0.0
    %957 = vmatpush1.msra.mxu0 0.0
    %958 = vmatprep.subr.mxu0 0.0
    %959 = vmatpush1.msra.mxu0 0.0
    %960 = vmatprep.subr.mxu0 0.0
    %961 = vmatpush1.msra.mxu0 0.0
    %962 = vmatprep.subr.mxu0 0.0
    %963 = vmatpush1.msra.mxu0 %v44
    %964 = vmatprep.subr.mxu0 0.0
    %965 = vmatpush1.msra.mxu0 %v43
    %966 = vmatprep.subr.mxu0 0.0
    %967 = vmatpush1.msra.mxu0 %v42
    %968 = vmatprep.subr.mxu0 0.0
    %969 = vmatpush1.msra.mxu0 %v41
    %970 = vmatprep.subr.mxu0 0.0
    %971 = vmatpush2.msra.mxu0 0.0
    %972 = vmatprep.subr.mxu0 0.0
    %973 = vmatpush2.msra.mxu0 0.0
    %974 = vmatprep.subr.mxu0 0.0
    %975 = vmatpush2.msra.mxu0 0.0
    %976 = vmatprep.subr.mxu0 0.0
    %977 = vmatpush2.msra.mxu0 0.0
    %978 = vmatprep.subr.mxu0 0.0
    %979 = vmatpush2.msra.mxu0 0.0
    %980 = vmatprep.subr.mxu0 0.0
    %981 = vmatpush2.msra.mxu0 0.0
    %982 = vmatprep.subr.mxu0 0.0
    %983 = vmatpush2.msra.mxu0 0.0
    %984 = vmatprep.subr.mxu0 0.0
    %985 = vmatpush2.msra.mxu0 0.0
    %986 = vmatprep.subr.mxu0 0.0
    %987 = vmatpush2.msra.mxu0 0.0
    %988 = vmatprep.subr.mxu0 0.0
    %989 = vmatpush2.msra.mxu0 0.0
    %990 = vmatprep.subr.mxu0 0.0
    %991 = vmatpush2.msra.mxu0 0.0
    %992 = vmatprep.subr.mxu0 0.0
    %993 = vmatpush2.msra.mxu0 0.0
    %994 = vmatprep.subr.mxu0 0.0
    %995 = vmatpush2.msra.mxu0 0.0
    %996 = vmatprep.subr.mxu0 0.0
    %997 = vmatpush2.msra.mxu0 0.0
    %998 = vmatprep.subr.mxu0 0.0
    %999 = vmatpush2.msra.mxu0 0.0
    %1000 = vmatprep.subr.mxu0 0.0
    %1001 = vmatpush2.msra.mxu0 0.0
    %1002 = vmatprep.mubr.f32.mxu0 0.0
    %1003 = vmatmul.mubr.f32.gmra.mxu0 %v936
    %v1004 = vpop.f32.mrf.mxu0
    %v1005 = vadd.f32 %v931, %v1004
    %v1006 = vpop.f32.mrf.mxu0
    %1007 = vdwg.mxu0
    %v1008 = vmax.f32 %v1005, 0.0
    %1009 = vst [vmem:[%s2] sm:$0xff] %v1008
    // Predicated region
    $region14: #{wine_lstm_forward.1} parent=1 // pred_check
      _
    $region15: #{wine_lstm_forward.1} parent=1 // pred_check_branch
      %1011 = sbr.rel (0) target = $region17
    $region16: #{wine_lstm_forward.1} parent=1 // pred_region
      _
    $region17: #{wine_lstm_forward.1} parent=1 // pred_fallthru
      _
    // Predicated region
    $region18: #{wine_lstm_forward.1} parent=1 // pred_check
      _
    $region19: #{wine_lstm_forward.1} parent=1 // pred_check_branch
      %1013 = sbr.rel (0) target = $region21
    $region20: #{wine_lstm_forward.1} parent=1 // pred_region
      _
    $region21: #{wine_lstm_forward.1} parent=1 // pred_fallthru
      _
    %1014 = vsyncpa [#allocation3], 1

</llo_original>
